<compile_context>
chip_gen: v7x
topology: tpu7x:2x2x1
jax: 0.10.0
libtpu: 0.0.40
codegen_flags: <defaults>
</compile_context>

<pallas_src>
import functools
import math

import jax
import jax.numpy as jnp
from jax.experimental import pallas as pl
from jax.experimental.pallas import tpu as pltpu

EPS = 1e-5


# ---------------------------------------------------------------------------
# Kernels
# ---------------------------------------------------------------------------
def _ln_kernel_unpacked(x_ref, w_ref, o_ref, *, inv_c):
    # x_ref: (T, C)   w_ref: (1, C) f32   o_ref: (T, C);  C % 128 == 0 (or full dim)
    xf = x_ref[...].astype(jnp.float32)
    mu = jnp.sum(xf, axis=-1, keepdims=True) * inv_c
    xc = xf - mu                                            # two-pass variance
    var = jnp.sum(xc * xc, axis=-1, keepdims=True) * inv_c  # unbiased=False
    inv = jax.lax.rsqrt(var + EPS)
    scale = inv * w_ref[...]                                # (T, C) f32
    if o_ref.dtype == jnp.float32:
        o_ref[...] = xf * scale
    else:
        # bf16/fp16 fast path: single native-dtype multiply on the stream.
        o_ref[...] = (x_ref[...] * scale.astype(o_ref.dtype)).astype(o_ref.dtype)


def _ln_kernel_packed(x_ref, b_ref, bt_ref, btw_ref, o_ref, *, inv_c):
    # x_ref:   (T, k*C)    k*C multiple of 128 -> lane-dense, unmasked stores
    # b_ref:   (k*C, 128)  block-diagonal 0/1 reduce matrix (columns >= k are 0)
    # bt_ref:  (128, k*C)  its transpose (per-segment broadcast)
    # btw_ref: (128, k*C)  transpose scaled by the tiled f32 weight
    xf = x_ref[...].astype(jnp.float32)
    b = b_ref[...]
    # Per-row, per-segment sums via MXU (MXU is idle in this HBM-streaming op).
    s1 = jnp.dot(xf, b, preferred_element_type=jnp.float32)          # (T, 128)
    mu = s1 * inv_c
    mu_full = jnp.dot(mu, bt_ref[...], preferred_element_type=jnp.float32)
    xc = xf - mu_full                                                # two-pass
    s2 = jnp.dot(xc * xc, b, preferred_element_type=jnp.float32)     # (T, 128)
    inv = jax.lax.rsqrt(s2 * inv_c + EPS)                            # (T, 128)
    # Broadcast inv back per segment with the weight folded in (one MXU op).
    scale = jnp.dot(inv, btw_ref[...], preferred_element_type=jnp.float32)
    if o_ref.dtype == jnp.float32:
        o_ref[...] = xf * scale
    else:
        o_ref[...] = (x_ref[...] * scale.astype(o_ref.dtype)).astype(o_ref.dtype)


# ---------------------------------------------------------------------------
# Tiling / budgeting helpers
# ---------------------------------------------------------------------------
def _vmem_budgets():
    """(scoped vmem limit, tile working-set budget, #TensorCores) per generation."""
    cap = 64 * 1024 * 1024
    try:
        cap = int(getattr(pltpu.get_tpu_info(), "vmem_capacity_bytes", cap))
    except Exception:  # query unavailable -> conservative (v7x-sized) defaults
        pass
    if cap >= 128 * 1024 * 1024:
        # v5e / v6e: 128 MiB physical VMEM, single TensorCore.
        return 96 * 1024 * 1024, 48 * 1024 * 1024, 1
    # v7x-class: 64 MiB physical VMEM per TensorCore, 2 TensorCores.
    return 32 * 1024 * 1024, 16 * 1024 * 1024, 2


def _pack_factor(c, n_rows):
    """Smallest k with (k*c) % 128 == 0, or 1 if packing is not worthwhile."""
    if c % 128 == 0:
        return 1
    k = 128 // math.gcd(c, 128)
    if k > 16 or n_rows < 2 * k:
        return 1  # fall back to the masked-store path (rare / tiny inputs)
    return k


def _pick_tile_rows(n_rows, width, itemsize, budget, cores):
    """Largest row tile whose double-buffered I/O + f32 temporaries fit `budget`."""
    itemsize = max(int(itemsize), 1)
    sub = max(8, 32 // itemsize)               # dtype-native sublane multiple
    # 2 pipeline buffers x (input + output) in the native dtype, plus ~8 B/elem
    # for the in-kernel f32 temporaries (upcast / centered copy / scale).
    per_row = width * (4 * itemsize + 8)
    max_rows = max(sub, budget // per_row)
    # Cap so each step still moves >= ~2 MiB (amortizes ~0.35us/step overhead).
    cap = max(1024, (2 * 1024 * 1024) // max(width * itemsize, 1))
    tile = min(cap, max_rows, n_rows)
    tile = max(sub, (tile // sub) * sub)
    # Keep >=2 grid steps when possible (double-buffer overlap; both v7x cores)
    # but do NOT force more: on 1-TC chips the grid is a serial loop and extra
    # steps are pure per-step overhead.
    min_steps = min(2, pl.cdiv(n_rows, sub))
    while tile > sub and pl.cdiv(n_rows, tile) < min_steps:
        tile = max(sub, ((tile // 2) // sub) * sub)
    if cores >= 2:
        # Mild preference for a step count both TensorCores can split evenly.
        steps = pl.cdiv(n_rows, tile)
        tries = 0
        while steps > 1 and steps % cores != 0 and tile > sub and tries < 8:
            tile = max(sub, tile - sub)
            steps = pl.cdiv(n_rows, tile)
            tries += 1
    return int(tile)


# ---------------------------------------------------------------------------
# Wrapper
# ---------------------------------------------------------------------------
def biasfree_layernorm(x, weight, *, tile_rows=None):
    """y = x * rsqrt(var(x, -1, unbiased=False) + 1e-5) * weight, over last dim."""
    orig_shape = x.shape
    C = int(orig_shape[-1])
    n_rows = 1
    for d in orig_shape[:-1]:
        n_rows *= int(d)
    x2 = x.reshape(n_rows, C)
    w32 = weight.reshape(C).astype(jnp.float32)  # keep learned scale in f32

    vmem_limit, budget, cores = _vmem_budgets()
    itemsize = jnp.dtype(x.dtype).itemsize
    k = _pack_factor(C, n_rows)

    compiler_params = pltpu.CompilerParams(
        dimension_semantics=("parallel",),
        vmem_limit_bytes=vmem_limit,
    )

    if k > 1:
        # ---- lane-dense packed path (C=48/96/192, ... ) ----
        pad = (-n_rows) % k
        if pad:
            x2 = jnp.concatenate([x2, jnp.zeros((pad, C), x2.dtype)], axis=0)
        r = (n_rows + pad) // k
        kc = k * C                              # multiple of 128
        xp = x2.reshape(r, kc)                  # metadata-only reshape when pad==0
        kp = 128                                # pad segment axis to a full lane tile
        seg = jnp.arange(kc, dtype=jnp.int32) // C
        col = jnp.arange(kp, dtype=jnp.int32)
        b = (seg[:, None] == col[None, :]).astype(jnp.float32)   # (kc, kp)
        bt = b.T                                                  # (kp, kc)
        btw = bt * jnp.tile(w32, k)[None, :]                      # weighted broadcast

        if tile_rows is None:
            tile_rows = _pick_tile_rows(r, kc, itemsize, budget, cores)
        grid = (pl.cdiv(r, tile_rows),)
        out = pl.pallas_call(
            functools.partial(_ln_kernel_packed, inv_c=1.0 / C),
            out_shape=jax.ShapeDtypeStruct((r, kc), x.dtype),
            grid_spec=pltpu.PrefetchScalarGridSpec(
                num_scalar_prefetch=0,
                grid=grid,
                in_specs=[
                    pl.BlockSpec((tile_rows, kc), lambda i: (i, 0)),
                    pl.BlockSpec((kc, kp), lambda i: (0, 0)),
                    pl.BlockSpec((kp, kc), lambda i: (0, 0)),
                    pl.BlockSpec((kp, kc), lambda i: (0, 0)),
                ],
                out_specs=pl.BlockSpec((tile_rows, kc), lambda i: (i, 0)),
            ),
            compiler_params=compiler_params,
        )(xp, b, bt, btw)
        out = out.reshape(r * k, C)
        if pad:
            out = out[:n_rows]
    else:
        # ---- unpacked path (C % 128 == 0, or fallback for awkward C) ----
        w2 = w32.reshape(1, C)
        if tile_rows is None:
            tile_rows = _pick_tile_rows(n_rows, C, itemsize, budget, cores)
        grid = (pl.cdiv(n_rows, tile_rows),)
        out = pl.pallas_call(
            functools.partial(_ln_kernel_unpacked, inv_c=1.0 / C),
            out_shape=jax.ShapeDtypeStruct((n_rows, C), x.dtype),
            grid_spec=pltpu.PrefetchScalarGridSpec(
                num_scalar_prefetch=0,
                grid=grid,
                in_specs=[
                    pl.BlockSpec((tile_rows, C), lambda i: (i, 0)),
                    pl.BlockSpec((1, C), lambda i: (0, 0)),
                ],
                out_specs=pl.BlockSpec((tile_rows, C), lambda i: (i, 0)),
            ),
            compiler_params=compiler_params,
        )(x2, w2)

    return out.reshape(orig_shape)


def _reference_biasfree_layernorm(x, weight):
    mu = jnp.mean(x, axis=-1, keepdims=True)
    var = jnp.mean((x - mu) ** 2, axis=-1, keepdims=True)  # unbiased=False
    return x / jnp.sqrt(var + EPS) * weight


if __name__ == "__main__":
    key = jax.random.PRNGKey(0)
    kx1, kx2, kx3, kw1, kw2, kw3 = jax.random.split(key, 6)

    # 1) Restormer-style C=48: lane-dense packed path (k=8, packed width 384),
    #    plus row padding (262 % 8 != 0) and a partial last grid block.
    bsz, hw, c = 2, 131, 48
    x1 = jax.random.normal(kx1, (bsz, hw, c), jnp.float32)
    w1 = jnp.ones((c,), jnp.float32) + 0.1 * jax.random.normal(kw1, (c,), jnp.float32)
    y1 = jax.block_until_ready(biasfree_layernorm(x1, w1))
    r1 = _reference_biasfree_layernorm(x1, w1)
    assert y1.shape == x1.shape
    assert jnp.allclose(y1, r1, atol=3e-5, rtol=3e-5), "packed f32 path mismatch"

    # 2) C multiple of 128: unpacked lane-dense path.
    x2 = jax.random.normal(kx2, (2, 8, 256), jnp.float32)
    w2 = jnp.ones((256,), jnp.float32) + 0.1 * jax.random.normal(kw2, (256,), jnp.float32)
    y2 = jax.block_until_ready(biasfree_layernorm(x2, w2))
    r2 = _reference_biasfree_layernorm(x2, w2)
    assert jnp.allclose(y2, r2, atol=3e-5, rtol=3e-5), "unpacked f32 path mismatch"

    # 3) bf16 activations with f32 weight: f32 statistics + bf16 output scaling.
    x3 = jax.random.normal(kx3, (2, 64, 96), jnp.float32).astype(jnp.bfloat16)
    w3 = jnp.ones((96,), jnp.float32) + 0.1 * jax.random.normal(kw3, (96,), jnp.float32)
    y3 = jax.block_until_ready(biasfree_layernorm(x3, w3))
    r3 = _reference_biasfree_layernorm(x3.astype(jnp.float32), w3)
    assert jnp.allclose(y3.astype(jnp.float32), r3, atol=5e-2, rtol=5e-2), "bf16 path mismatch"

    print("KERNEL_OK")
</pallas_src>

<mosaic_0001>
module attributes {stable_mosaic.version = 11 : i64} {
  func.func @_ln_kernel_packed(%arg0: i32, %arg1: memref<32x384xf32, #tpu.memory_space<vmem>>, %arg2: memref<384x128xf32, #tpu.memory_space<vmem>>, %arg3: memref<128x384xf32, #tpu.memory_space<vmem>>, %arg4: memref<128x384xf32, #tpu.memory_space<vmem>>, %arg5: memref<32x384xf32, #tpu.memory_space<vmem>>) attributes {dimension_semantics = [#tpu.dimension_semantics<parallel>], iteration_bounds = array<i64: 2>, scalar_prefetch = 0 : i64, scratch_operands = 0 : i64, tpu.core_type = #tpu.core_type<tc>, window_params = [{transform_indices = @transform_0, window_bounds = array<i64: 32, 384>}, {pipeline_mode = #tpu.pipeline_mode<synchronous>, transform_indices = @transform_1, window_bounds = array<i64: 384, 128>}, {pipeline_mode = #tpu.pipeline_mode<synchronous>, transform_indices = @transform_2, window_bounds = array<i64: 128, 384>}, {pipeline_mode = #tpu.pipeline_mode<synchronous>, transform_indices = @transform_3, window_bounds = array<i64: 128, 384>}, {transform_indices = @transform_4, window_bounds = array<i64: 32, 384>}]} {
    %c0 = arith.constant 0 : index
    %c0_0 = arith.constant 0 : index
    %0 = vector.load %arg1[%c0, %c0_0] : memref<32x384xf32, #tpu.memory_space<vmem>>, vector<32x384xf32>
    %c0_1 = arith.constant 0 : index
    %c0_2 = arith.constant 0 : index
    %1 = vector.load %arg2[%c0_1, %c0_2] : memref<384x128xf32, #tpu.memory_space<vmem>>, vector<384x128xf32>
    %cst = arith.constant dense<0.000000e+00> : vector<32x128xf32>
    %2 = tpu.matmul %0, %1, %cst {dimension_numbers = #tpu.dot_dimension_numbers<[1], [0], [0], [1], [0, 0, 1, 1], [], []>} : vector<32x384xf32>, vector<384x128xf32>, vector<32x128xf32> -> vector<32x128xf32>
    %cst_3 = arith.constant 0.020833334 : f32
    %3 = vector.broadcast %cst_3 : f32 to vector<32x128xf32>
    %4 = arith.mulf %2, %3 : vector<32x128xf32>
    %c0_4 = arith.constant 0 : index
    %c0_5 = arith.constant 0 : index
    %5 = vector.load %arg3[%c0_4, %c0_5] : memref<128x384xf32, #tpu.memory_space<vmem>>, vector<128x384xf32>
    %cst_6 = arith.constant dense<0.000000e+00> : vector<32x384xf32>
    %6 = tpu.matmul %4, %5, %cst_6 {dimension_numbers = #tpu.dot_dimension_numbers<[1], [0], [0], [1], [0, 0, 1, 1], [], []>} : vector<32x128xf32>, vector<128x384xf32>, vector<32x384xf32> -> vector<32x384xf32>
    %7 = arith.subf %0, %6 : vector<32x384xf32>
    %8 = arith.mulf %7, %7 : vector<32x384xf32>
    %cst_7 = arith.constant dense<0.000000e+00> : vector<32x128xf32>
    %9 = tpu.matmul %8, %1, %cst_7 {dimension_numbers = #tpu.dot_dimension_numbers<[1], [0], [0], [1], [0, 0, 1, 1], [], []>} : vector<32x384xf32>, vector<384x128xf32>, vector<32x128xf32> -> vector<32x128xf32>
    %cst_8 = arith.constant 0.020833334 : f32
    %10 = vector.broadcast %cst_8 : f32 to vector<32x128xf32>
    %11 = arith.mulf %9, %10 : vector<32x128xf32>
    %cst_9 = arith.constant 9.99999974E-6 : f32
    %12 = vector.broadcast %cst_9 : f32 to vector<32x128xf32>
    %13 = arith.addf %11, %12 : vector<32x128xf32>
    %14 = math.rsqrt %13 : vector<32x128xf32>
    %c0_10 = arith.constant 0 : index
    %c0_11 = arith.constant 0 : index
    %15 = vector.load %arg4[%c0_10, %c0_11] : memref<128x384xf32, #tpu.memory_space<vmem>>, vector<128x384xf32>
    %cst_12 = arith.constant dense<0.000000e+00> : vector<32x384xf32>
    %16 = tpu.matmul %14, %15, %cst_12 {dimension_numbers = #tpu.dot_dimension_numbers<[1], [0], [0], [1], [0, 0, 1, 1], [], []>} : vector<32x128xf32>, vector<128x384xf32>, vector<32x384xf32> -> vector<32x384xf32>
    %17 = arith.mulf %0, %16 : vector<32x384xf32>
    %c0_13 = arith.constant 0 : index
    %c0_14 = arith.constant 0 : index
    %18 = vector.load %arg5[%c0_13, %c0_14] : memref<32x384xf32, #tpu.memory_space<vmem>>, vector<32x384xf32>
    tpu.vector_store %arg5[%c0_13, %c0_14], %17 {strides = array<i32>} : memref<32x384xf32, #tpu.memory_space<vmem>>, vector<32x384xf32>,
    return
  }
  func.func @transform_0(%arg0: i32) -> (i32, i32) {
    %c0_i32 = arith.constant 0 : i32
    %c0_i32_0 = arith.constant 0 : i32
    return %arg0, %c0_i32 : i32, i32
  }
  func.func @transform_1(%arg0: i32) -> (i32, i32) {
    %c0_i32 = arith.constant 0 : i32
    %c0_i32_0 = arith.constant 0 : i32
    %c0_i32_1 = arith.constant 0 : i32
    return %c0_i32, %c0_i32_0 : i32, i32
  }
  func.func @transform_2(%arg0: i32) -> (i32, i32) {
    %c0_i32 = arith.constant 0 : i32
    %c0_i32_0 = arith.constant 0 : i32
    %c0_i32_1 = arith.constant 0 : i32
    return %c0_i32, %c0_i32_0 : i32, i32
  }
  func.func @transform_3(%arg0: i32) -> (i32, i32) {
    %c0_i32 = arith.constant 0 : i32
    %c0_i32_0 = arith.constant 0 : i32
    %c0_i32_1 = arith.constant 0 : i32
    return %c0_i32, %c0_i32_0 : i32, i32
  }
  func.func @transform_4(%arg0: i32) -> (i32, i32) {
    %c0_i32 = arith.constant 0 : i32
    %c0_i32_0 = arith.constant 0 : i32
    return %arg0, %c0_i32 : i32, i32
  }
}

</mosaic_0001>

<llo_original>
// kernel: tpu_custom_call.1
$region0: #{tpu_custom_call.1}
  #allocation0 [shape = 'u32[]', space=smem, size = 0x4, offset = 0x4, fixed_abs, tag = 'smem constant byte address 0x4 - core index']
  #allocation1 [shape = 'u32[144,128]{1,0:T(1,128)}', space=vmem, size = 0x12000, scoped, tag = 'internal scratch']
  %s0 = inlined_call_operand.hbm [shape: f32[33,384], index: 0, kind: input, shape index: {}]
  %s1 = inlined_call_operand.hbm [shape: f32[384,128], index: 1, kind: input, shape index: {}]
  %s2 = inlined_call_operand.hbm [shape: f32[128,384], index: 2, kind: input, shape index: {}]
  %s3 = inlined_call_operand.hbm [shape: f32[128,384], index: 3, kind: input, shape index: {}]
  %s4 = inlined_call_operand.hbm [shape: f32[33,384], index: 4, kind: output, shape index: {}]
  %s5 = sld [smem:[#allocation0]]
  $region65: #{tpu_custom_call.1} parent=0
    _
  %s7 = ssub.s32 1, %s5
  %s8 = scalar_select 0, %s7, %s5
  $region1: #{tpu_custom_call.1} parent=0
    #allocation2 [shape = 'u8[98304]{0}', space=vmem, size = 0x18000, scoped, tag = 'input window, operand 0']
    #allocation3 [shape = 's32[2]{0}', space=sflag, size = 0x8, scoped, tag = 'scoped memory for tpu_custom_call.1']
    #allocation4 [shape = 's32[2]{0}', space=sflag, size = 0x8, scoped, tag = 'scoped memory for tpu_custom_call.1']
    #allocation5 [shape = 'u8[196608]{0}', space=vmem, size = 0x30000, scoped, tag = 'input window, operand 1, single buffered']
    #allocation6 [shape = 's32[1]{0}', space=sflag, size = 0x4, scoped, tag = 'scoped memory for tpu_custom_call.1']
    #allocation7 [shape = 'u8[196608]{0}', space=vmem, size = 0x30000, scoped, tag = 'input window, operand 2, single buffered']
    #allocation8 [shape = 'u8[196608]{0}', space=vmem, size = 0x30000, scoped, tag = 'input window, operand 3, single buffered']
    #allocation9 [shape = 's32[1]{0}', space=sflag, size = 0x4, scoped, tag = 'scoped memory for tpu_custom_call.1']
    #allocation10 [shape = 'u8[98304]{0}', space=vmem, size = 0x18000, scoped, tag = 'output window, operand 0']
    %9 = vsyncpa [#allocation3], 0
    %s10 = scalar_lea.sflag [#allocation3], 1
    %11 = vsyncpa %s10, 0
    %12 = vsyncpa [#allocation6], 0
    %13 = vsyncpa [#allocation9], 0
    %14 = vsyncpa [#allocation4], 0
    %s15 = scalar_lea.sflag [#allocation4], 1
    %16 = vsyncpa %s15, 0
    loop: start=0, step=1, limit=4
    $region2: #{tpu_custom_call.1} parent=1 // loop_pre_header
      _
    $region3: #{tpu_custom_call.1} parent=1 // loop_header
      %s18 = sphi 0, %s22
      %p19 = scmp.ge.s32.totalorder %s18, 4
      %s28 = sphi 0, %s30
      %s31 = sphi 0, %s28
      %s32 = sphi 0, %s31
      %s48 = sphi 0, %s32
      %s52 = sphi 0, %s52
      %s54 = sphi 0, %s52
      %s55 = sphi 0, %s54
      %s69 = sphi 0, %s55
      %s73 = sphi 0, %s73
      %s75 = sphi 0, %s73
      %s76 = sphi 0, %s75
      %s90 = sphi 0, %s76
      %s94 = sphi 0, %s94
      %s96 = sphi 0, %s94
      %s97 = sphi 0, %s96
      %s111 = sphi 0, %s97
      %s117 = sphi 0, %s119
      %s120 = sphi 0, %s117
      %s121 = sphi 0, %s120
      %s137 = sphi 0, %s121
    $region4: #{tpu_custom_call.1} parent=1 // loop_header_branch
      %21 = sbr.rel (%p19) target = $region8
    $region5: #{tpu_custom_call.1} parent=1 // loop_body
      %s23 = ssub.s32 %s18, 1
      %s24 = ssub.s32 %s18, 2
      %s25 = sadd.s32 %s18, 1
      %s26 = ssub.s32 %s18, %s25
      %p27 = scmp.eq.s32.totalorder %s26, 0
      %s29 = sadd.s32 %s28, 1
      %s30 = scalar_select %p27, %s28, %s29
      %p33 = pneg %p27
      %p34 = scmp.eq.s32.totalorder %s18, 1
      %p35 = por %p33, %p34
      %p36 = scmp.ne.s32.totalorder %s28, %s31
      %p37 = scmp.eq.s32.totalorder %s18, 0
      %p38 = por %p36, %p37
      %p39 = scmp.ne.s32.totalorder %s28, %s31
      %p40 = scmp.eq.s32.totalorder %s23, 1
      %p41 = por %p39, %p40
      %p42 = scmp.ne.s32.totalorder %s31, %s32
      %p43 = scmp.eq.s32.totalorder %s23, 0
      %p44 = por %p42, %p43
      %p45 = scmp.ne.s32.totalorder %s31, %s32
      %p46 = scmp.eq.s32.totalorder %s24, 1
      %p47 = por %p45, %p46
      %p49 = scmp.ne.s32.totalorder %s32, %s48
      %p50 = scmp.eq.s32.totalorder %s24, 0
      %p51 = por %p49, %p50
      %s53 = sadd.s32 %s52, 1
      %p56 = scmp.eq.s32.totalorder %s18, 1
      %p57 = scmp.ne.s32.totalorder %s52, %s54
      %p58 = scmp.eq.s32.totalorder %s18, 0
      %p59 = por %p57, %p58
      %p60 = scmp.ne.s32.totalorder %s52, %s54
      %p61 = scmp.eq.s32.totalorder %s23, 1
      %p62 = por %p60, %p61
      %p63 = scmp.ne.s32.totalorder %s54, %s55
      %p64 = scmp.eq.s32.totalorder %s23, 0
      %p65 = por %p63, %p64
      %p66 = scmp.ne.s32.totalorder %s54, %s55
      %p67 = scmp.eq.s32.totalorder %s24, 1
      %p68 = por %p66, %p67
      %p70 = scmp.ne.s32.totalorder %s55, %s69
      %p71 = scmp.eq.s32.totalorder %s24, 0
      %p72 = por %p70, %p71
      %s74 = sadd.s32 %s73, 1
      %p77 = scmp.eq.s32.totalorder %s18, 1
      %p78 = scmp.ne.s32.totalorder %s73, %s75
      %p79 = scmp.eq.s32.totalorder %s18, 0
      %p80 = por %p78, %p79
      %p81 = scmp.ne.s32.totalorder %s73, %s75
      %p82 = scmp.eq.s32.totalorder %s23, 1
      %p83 = por %p81, %p82
      %p84 = scmp.ne.s32.totalorder %s75, %s76
      %p85 = scmp.eq.s32.totalorder %s23, 0
      %p86 = por %p84, %p85
      %p87 = scmp.ne.s32.totalorder %s75, %s76
      %p88 = scmp.eq.s32.totalorder %s24, 1
      %p89 = por %p87, %p88
      %p91 = scmp.ne.s32.totalorder %s76, %s90
      %p92 = scmp.eq.s32.totalorder %s24, 0
      %p93 = por %p91, %p92
      %s95 = sadd.s32 %s94, 1
      %p98 = scmp.eq.s32.totalorder %s18, 1
      %p99 = scmp.ne.s32.totalorder %s94, %s96
      %p100 = scmp.eq.s32.totalorder %s18, 0
      %p101 = por %p99, %p100
      %p102 = scmp.ne.s32.totalorder %s94, %s96
      %p103 = scmp.eq.s32.totalorder %s23, 1
      %p104 = por %p102, %p103
      %p105 = scmp.ne.s32.totalorder %s96, %s97
      %p106 = scmp.eq.s32.totalorder %s23, 0
      %p107 = por %p105, %p106
      %p108 = scmp.ne.s32.totalorder %s96, %s97
      %p109 = scmp.eq.s32.totalorder %s24, 1
      %p110 = por %p108, %p109
      %p112 = scmp.ne.s32.totalorder %s97, %s111
      %p113 = scmp.eq.s32.totalorder %s24, 0
      %p114 = por %p112, %p113
      %s115 = ssub.s32 %s18, %s25
      %p116 = scmp.eq.s32.totalorder %s115, 0
      %s118 = sadd.s32 %s117, 1
      %s119 = scalar_select %p116, %s117, %s118
      %p122 = pneg %p116
      %p123 = scmp.eq.s32.totalorder %s18, 1
      %p124 = por %p122, %p123
      %p125 = scmp.ne.s32.totalorder %s117, %s120
      %p126 = scmp.eq.s32.totalorder %s18, 0
      %p127 = por %p125, %p126
      %p128 = scmp.ne.s32.totalorder %s117, %s120
      %p129 = scmp.eq.s32.totalorder %s23, 1
      %p130 = por %p128, %p129
      %p131 = scmp.ne.s32.totalorder %s120, %s121
      %p132 = scmp.eq.s32.totalorder %s23, 0
      %p133 = por %p131, %p132
      %p134 = scmp.ne.s32.totalorder %s120, %s121
      %p135 = scmp.eq.s32.totalorder %s24, 1
      %p136 = por %p134, %p135
      %p138 = scmp.ne.s32.totalorder %s121, %s137
      %p139 = scmp.eq.s32.totalorder %s24, 0
      %p140 = por %p138, %p139
      %p141 = scmp.le.s32.totalorder 1, %s18
      %p142 = scmp.lt.s32.totalorder %s18, 3
      %p143 = pnand %p141, %p142
      %p144 = pneg %p143
      // Predicated region
      $region9: #{tpu_custom_call.1} parent=5 // pred_check
        _
      $region10: #{tpu_custom_call.1} parent=5 // pred_check_branch
        %146 = sbr.rel (%p143) target = $region12
      $region11: #{tpu_custom_call.1} parent=5 // pred_region
        %s147 = ssub.s32 %s18, 1
        // Predicated region
        $region13: #{tpu_custom_call.1} parent=11 // pred_check
          %p148 = pneg %p65
        $region14: #{tpu_custom_call.1} parent=11 // pred_check_branch
          %150 = sbr.rel (%p148) target = $region16
        $region15: #{tpu_custom_call.1} parent=11 // pred_region
          %s152 = ssub.s32 6144, 6144
          %153 = vsyncadd [#allocation6], %s152
          %s154 = sshll.u32 [#allocation5], 4
          %s155 = int_to_ptr.vmem [resolvable:$true] %s154
          %160 = dma.hbm_to_vmem [thread:$0]  %s1, 6144, %s155, [#allocation6], 128, 128, 8
        $region16: #{tpu_custom_call.1} parent=11 // pred_fallthru
          _
        // Predicated region
        $region17: #{tpu_custom_call.1} parent=11 // pred_check
          %p161 = pneg %p86
        $region18: #{tpu_custom_call.1} parent=11 // pred_check_branch
          %163 = sbr.rel (%p161) target = $region20
        $region19: #{tpu_custom_call.1} parent=11 // pred_region
          %s165 = ssub.s32 6144, 6144
          %166 = vsyncadd [#allocation6], %s165
          %s167 = sshll.u32 [#allocation7], 4
          %s168 = int_to_ptr.vmem [resolvable:$true] %s167
          %173 = dma.hbm_to_vmem [thread:$0]  %s2, 6144, %s168, [#allocation6], 384, 384, 24
        $region20: #{tpu_custom_call.1} parent=11 // pred_fallthru
          _
        // Predicated region
        $region21: #{tpu_custom_call.1} parent=11 // pred_check
          %p174 = pneg %p107
        $region22: #{tpu_custom_call.1} parent=11 // pred_check_branch
          %176 = sbr.rel (%p174) target = $region24
        $region23: #{tpu_custom_call.1} parent=11 // pred_region
          %s178 = ssub.s32 6144, 6144
          %179 = vsyncadd [#allocation9], %s178
          %s180 = sshll.u32 [#allocation8], 4
          %s181 = int_to_ptr.vmem [resolvable:$true] %s180
          %186 = dma.hbm_to_vmem [thread:$0]  %s3, 6144, %s181, [#allocation9], 384, 384, 24
        $region24: #{tpu_custom_call.1} parent=11 // pred_fallthru
          _
      $region12: #{tpu_custom_call.1} parent=5 // pred_fallthru
        _
      %p187 = scmp.lt.s32.totalorder %s18, 2
      // Predicated region
      $region25: #{tpu_custom_call.1} parent=5 // pred_check
        %p188 = pneg %p187
      $region26: #{tpu_custom_call.1} parent=5 // pred_check_branch
        %190 = sbr.rel (%p188) target = $region28
      $region27: #{tpu_custom_call.1} parent=5 // pred_region
        // Predicated region
        $region29: #{tpu_custom_call.1} parent=27 // pred_check
          %p191 = pneg %p38
        $region30: #{tpu_custom_call.1} parent=27 // pred_check_branch
          %193 = sbr.rel (%p191) target = $region32
        $region31: #{tpu_custom_call.1} parent=27 // pred_region
          %s194 = sand.u32 %s28, 1
          %s195 = scalar_lea.sflag [#allocation3], %s194
          %s196 = sand.u32 %s28, 1
          %s197 = smul.addr %s196, 96
          %s198 = scalar_lea.vmem [#allocation2], %s197
          %s199 = smul.u32 4, %s18
          %s200 = ssub.s32 5, %s199
          %p201 = scmp.lt.s32.totalorder %s200, 4
          %s202 = scalar_select %p201, %s200, 4
          %s203 = smul.u32 128, %s202
          %s204 = smul.u32 %s203, 3
          %s206 = ssub.s32 1536, %s204
          %207 = vsyncadd %s195, %s206
          %p208 = scmp.ne.s32.totalorder 0, %s204
          %s209 = smul.addr %s199, 3
          %s210 = smul.addr %s209, 128
          %s211 = scalar_lea.hbm %s0, %s210
          %s212 = smul.u32 24, %s202
          %s213 = sshll.u32 %s198, 4
          %s214 = int_to_ptr.vmem [resolvable:$true] %s213
          %s215 = sshll.u32 %s212, 4
          %219 = dma.hbm_to_vmem [thread:$0]  (%p208), %s211, %s215, %s214, %s195, 384, 384, 24
        $region32: #{tpu_custom_call.1} parent=27 // pred_fallthru
          _
      $region28: #{tpu_custom_call.1} parent=5 // pred_fallthru
        _
      %p220 = scmp.le.s32.totalorder 1, %s18
      %p221 = scmp.lt.s32.totalorder %s18, 3
      %p222 = pnand %p220, %p221
      %p223 = pneg %p222
      // Predicated region
      $region33: #{tpu_custom_call.1} parent=5 // pred_check
        _
      $region34: #{tpu_custom_call.1} parent=5 // pred_check_branch
        %225 = sbr.rel (%p222) target = $region36
      $region35: #{tpu_custom_call.1} parent=5 // pred_region
        %s226 = ssub.s32 %s18, 1
        %s227 = sand.u32 %s31, 1
        %s228 = scalar_lea.sflag [#allocation3], %s227
        %s229 = sand.u32 %s31, 1
        %s230 = smul.addr %s229, 96
        %s231 = scalar_lea.vmem [#allocation2], %s230
        // Predicated region
        $region37: #{tpu_custom_call.1} parent=35 // pred_check
          %p232 = pneg %p44
        $region38: #{tpu_custom_call.1} parent=35 // pred_check_branch
          %234 = sbr.rel (%p232) target = $region40
        $region39: #{tpu_custom_call.1} parent=35 // pred_region
          %235 = dma.done %s228, 1536
        $region40: #{tpu_custom_call.1} parent=35 // pred_fallthru
          _
        // Predicated region
        $region41: #{tpu_custom_call.1} parent=35 // pred_check
          %p236 = pneg %p65
        $region42: #{tpu_custom_call.1} parent=35 // pred_check_branch
          %238 = sbr.rel (%p236) target = $region44
        $region43: #{tpu_custom_call.1} parent=35 // pred_region
          %239 = dma.done [#allocation6], 6144
        $region44: #{tpu_custom_call.1} parent=35 // pred_fallthru
          _
        // Predicated region
        $region45: #{tpu_custom_call.1} parent=35 // pred_check
          %p240 = pneg %p86
        $region46: #{tpu_custom_call.1} parent=35 // pred_check_branch
          %242 = sbr.rel (%p240) target = $region48
        $region47: #{tpu_custom_call.1} parent=35 // pred_region
          %243 = dma.done [#allocation6], 6144
        $region48: #{tpu_custom_call.1} parent=35 // pred_fallthru
          _
        // Predicated region
        $region49: #{tpu_custom_call.1} parent=35 // pred_check
          %p244 = pneg %p107
        $region50: #{tpu_custom_call.1} parent=35 // pred_check_branch
          %246 = sbr.rel (%p244) target = $region52
        $region51: #{tpu_custom_call.1} parent=35 // pred_region
          %247 = dma.done [#allocation9], 6144
        $region52: #{tpu_custom_call.1} parent=35 // pred_fallthru
          _
        %s248 = sand.u32 %s31, 1
        %s249 = scalar_lea.sflag [#allocation3], %s248
        %s250 = sand.u32 %s31, 1
        %s251 = smul.addr %s250, 96
        %s252 = scalar_lea.vmem [#allocation2], %s251
        %p253 = pneg %p44
        %p254 = pneg %p41
        %p255 = pneg %p65
        %p256 = pneg %p62
        %p257 = pneg %p86
        %p258 = pneg %p83
        %p259 = pneg %p107
        %p260 = pneg %p104
        %p261 = pneg %p133
        %p262 = pneg %p130
        %s263 = sand.u32 %s120, 1
        %s264 = scalar_lea.sflag [#allocation4], %s263
        %s265 = sand.u32 %s120, 1
        %s266 = smul.addr %s265, 96
        %s267 = scalar_lea.vmem [#allocation10], %s266
        %s268 = smul.u32 4, %s23
        %s269 = ssub.s32 5, %s268
        %p270 = scmp.lt.s32.totalorder %s269, 4
        %s271 = scalar_select %p270, %s269, 4
        %s272 = smul.u32 128, %s271
        %s273 = smul.u32 %s272, 3
        %s274 = smul.u32 4, %s23
        %s275 = ssub.s32 5, %s274
        %p276 = scmp.lt.s32.totalorder %s275, 4
        %s277 = scalar_select %p276, %s275, 4
        %s278 = smul.u32 128, %s277
        %s279 = smul.u32 %s278, 3
        %v280 = vld [vmem:[%s231] sm:$0xff]
        %v281 = vld [vmem:[%s231 + $0x8] sm:$0xff]
        %v282 = vld [vmem:[%s231 + $0x10] sm:$0xff]
        %v283 = vld [vmem:[%s231 + $0x18] sm:$0xff]
        %v284 = vld [vmem:[%s231 + $0x20] sm:$0xff]
        %v285 = vld [vmem:[%s231 + $0x28] sm:$0xff]
        %v286 = vld [vmem:[%s231 + $0x30] sm:$0xff]
        %v287 = vld [vmem:[%s231 + $0x38] sm:$0xff]
        %v288 = vld [vmem:[%s231 + $0x40] sm:$0xff]
        %v289 = vld [vmem:[%s231 + $0x48] sm:$0xff]
        %v290 = vld [vmem:[%s231 + $0x50] sm:$0xff]
        %v291 = vld [vmem:[%s231 + $0x58] sm:$0xff]
        %v292 = vld [vmem:[#allocation5] sm:$0xff]
        %v293 = vld [vmem:[#allocation5 + $0x8] sm:$0xff]
        %v294 = vld [vmem:[#allocation5 + $0x10] sm:$0xff]
        %v295 = vld [vmem:[#allocation5 + $0x18] sm:$0xff]
        %v296 = vld [vmem:[#allocation5 + $0x20] sm:$0xff]
        %v297 = vld [vmem:[#allocation5 + $0x28] sm:$0xff]
        %v298 = vld [vmem:[#allocation5 + $0x30] sm:$0xff]
        %v299 = vld [vmem:[#allocation5 + $0x38] sm:$0xff]
        %v300 = vld [vmem:[#allocation5 + $0x40] sm:$0xff]
        %v301 = vld [vmem:[#allocation5 + $0x48] sm:$0xff]
        %v302 = vld [vmem:[#allocation5 + $0x50] sm:$0xff]
        %v303 = vld [vmem:[#allocation5 + $0x58] sm:$0xff]
        %v304 = vld [vmem:[#allocation5 + $0x60] sm:$0xff]
        %v305 = vld [vmem:[#allocation5 + $0x68] sm:$0xff]
        %v306 = vld [vmem:[#allocation5 + $0x70] sm:$0xff]
        %v307 = vld [vmem:[#allocation5 + $0x78] sm:$0xff]
        %v308 = vld [vmem:[#allocation5 + $0x80] sm:$0xff]
        %v309 = vld [vmem:[#allocation5 + $0x88] sm:$0xff]
        %v310 = vld [vmem:[#allocation5 + $0x90] sm:$0xff]
        %v311 = vld [vmem:[#allocation5 + $0x98] sm:$0xff]
        %v312 = vld [vmem:[#allocation5 + $0xa0] sm:$0xff]
        %v313 = vld [vmem:[#allocation5 + $0xa8] sm:$0xff]
        %v314 = vld [vmem:[#allocation5 + $0xb0] sm:$0xff]
        %v315 = vld [vmem:[#allocation5 + $0xb8] sm:$0xff]
        %v316 = vld [vmem:[#allocation5 + $0xc0] sm:$0xff]
        %v317 = vld [vmem:[#allocation5 + $0xc8] sm:$0xff]
        %v318 = vld [vmem:[#allocation5 + $0xd0] sm:$0xff]
        %v319 = vld [vmem:[#allocation5 + $0xd8] sm:$0xff]
        %v320 = vld [vmem:[#allocation5 + $0xe0] sm:$0xff]
        %v321 = vld [vmem:[#allocation5 + $0xe8] sm:$0xff]
        %v322 = vld [vmem:[#allocation5 + $0xf0] sm:$0xff]
        %v323 = vld [vmem:[#allocation5 + $0xf8] sm:$0xff]
        %v324 = vld [vmem:[#allocation5 + $0x100] sm:$0xff]
        %v325 = vld [vmem:[#allocation5 + $0x108] sm:$0xff]
        %v326 = vld [vmem:[#allocation5 + $0x110] sm:$0xff]
        %v327 = vld [vmem:[#allocation5 + $0x118] sm:$0xff]
        %v328 = vld [vmem:[#allocation5 + $0x120] sm:$0xff]
        %v329 = vld [vmem:[#allocation5 + $0x128] sm:$0xff]
        %v330 = vld [vmem:[#allocation5 + $0x130] sm:$0xff]
        %v331 = vld [vmem:[#allocation5 + $0x138] sm:$0xff]
        %v332 = vld [vmem:[#allocation5 + $0x140] sm:$0xff]
        %v333 = vld [vmem:[#allocation5 + $0x148] sm:$0xff]
        %v334 = vld [vmem:[#allocation5 + $0x150] sm:$0xff]
        %v335 = vld [vmem:[#allocation5 + $0x158] sm:$0xff]
        %v336 = vld [vmem:[#allocation5 + $0x160] sm:$0xff]
        %v337 = vld [vmem:[#allocation5 + $0x168] sm:$0xff]
        %v338 = vld [vmem:[#allocation5 + $0x170] sm:$0xff]
        %v339 = vld [vmem:[#allocation5 + $0x178] sm:$0xff]
        %340 = vmatprep.subr.mxu0 0.0
        %341 = vmatpush1.msra.mxu0 %v292
        %342 = vmatprep.subr.mxu0 0.0
        %343 = vmatpush1.msra.mxu0 %v293
        %344 = vmatprep.subr.mxu0 0.0
        %345 = vmatpush1.msra.mxu0 %v294
        %346 = vmatprep.subr.mxu0 0.0
        %347 = vmatpush1.msra.mxu0 %v295
        %348 = vmatprep.subr.mxu0 0.0
        %349 = vmatpush1.msra.mxu0 %v296
        %350 = vmatprep.subr.mxu0 0.0
        %351 = vmatpush1.msra.mxu0 %v297
        %352 = vmatprep.subr.mxu0 0.0
        %353 = vmatpush1.msra.mxu0 %v298
        %354 = vmatprep.subr.mxu0 0.0
        %355 = vmatpush1.msra.mxu0 %v299
        %356 = vmatprep.subr.mxu0 0.0
        %357 = vmatpush1.msra.mxu0 %v300
        %358 = vmatprep.subr.mxu0 0.0
        %359 = vmatpush1.msra.mxu0 %v301
        %360 = vmatprep.subr.mxu0 0.0
        %361 = vmatpush1.msra.mxu0 %v302
        %362 = vmatprep.subr.mxu0 0.0
        %363 = vmatpush1.msra.mxu0 %v303
        %364 = vmatprep.subr.mxu0 0.0
        %365 = vmatpush1.msra.mxu0 %v304
        %366 = vmatprep.subr.mxu0 0.0
        %367 = vmatpush1.msra.mxu0 %v305
        %368 = vmatprep.subr.mxu0 0.0
        %369 = vmatpush1.msra.mxu0 %v306
        %370 = vmatprep.subr.mxu0 0.0
        %371 = vmatpush1.msra.mxu0 %v307
        %372 = vmatprep.subr.mxu0 0.0
        %373 = vmatpush1.msra.mxu0 %v308
        %374 = vmatprep.subr.mxu0 0.0
        %375 = vmatpush1.msra.mxu0 %v309
        %376 = vmatprep.subr.mxu0 0.0
        %377 = vmatpush1.msra.mxu0 %v310
        %378 = vmatprep.subr.mxu0 0.0
        %379 = vmatpush1.msra.mxu0 %v311
        %380 = vmatprep.subr.mxu0 0.0
        %381 = vmatpush1.msra.mxu0 %v312
        %382 = vmatprep.subr.mxu0 0.0
        %383 = vmatpush1.msra.mxu0 %v313
        %384 = vmatprep.subr.mxu0 0.0
        %385 = vmatpush1.msra.mxu0 %v314
        %386 = vmatprep.subr.mxu0 0.0
        %387 = vmatpush1.msra.mxu0 %v315
        %388 = vmatprep.subr.mxu0 0.0
        %389 = vmatpush1.msra.mxu0 %v316
        %390 = vmatprep.subr.mxu0 0.0
        %391 = vmatpush1.msra.mxu0 %v317
        %392 = vmatprep.subr.mxu0 0.0
        %393 = vmatpush1.msra.mxu0 %v318
        %394 = vmatprep.subr.mxu0 0.0
        %395 = vmatpush1.msra.mxu0 %v319
        %396 = vmatprep.subr.mxu0 0.0
        %397 = vmatpush1.msra.mxu0 %v320
        %398 = vmatprep.subr.mxu0 0.0
        %399 = vmatpush1.msra.mxu0 %v321
        %400 = vmatprep.subr.mxu0 0.0
        %401 = vmatpush1.msra.mxu0 %v322
        %402 = vmatprep.subr.mxu0 0.0
        %403 = vmatpush1.msra.mxu0 %v323
        %404 = vmatprep.mubr.f32.mxu0 %v281
        %405 = vmatmul.mubr.f32.gmra.mrb[0].mxu0 %v280
        %v406 = vpop.f32.mrb[0].mxu0
        %v407 = vadd.f32 0.0, %v406
        %v408 = vpop.f32.mrb[0].mxu0
        %409 = vmatprep.mubr.f32.mxu0 %v284
        %410 = vmatmul.mubr.f32.gmra.mrb[0].mxu0 %v283
        %v411 = vpop.f32.mrb[0].mxu0
        %v412 = vadd.f32 0.0, %v411
        %v413 = vpop.f32.mrb[0].mxu0
        %414 = vmatprep.mubr.f32.mxu0 %v287
        %415 = vmatmul.mubr.f32.gmra.mrb[0].mxu0 %v286
        %v416 = vpop.f32.mrb[0].mxu0
        %v417 = vadd.f32 0.0, %v416
        %v418 = vpop.f32.mrb[0].mxu0
        %419 = vmatprep.mubr.f32.mxu0 %v290
        %420 = vmatmul.mubr.f32.gmra.mrb[0].mxu0 %v289
        %v421 = vpop.f32.mrb[0].mxu0
        %v422 = vadd.f32 0.0, %v421
        %v423 = vpop.f32.mrb[0].mxu0
        %424 = vdwg.mxu0
        %425 = vmatprep.subr.mxu0 0.0
        %426 = vmatpush1.msra.mxu0 %v324
        %427 = vmatprep.subr.mxu0 0.0
        %428 = vmatpush1.msra.mxu0 %v325
        %429 = vmatprep.subr.mxu0 0.0
        %430 = vmatpush1.msra.mxu0 %v326
        %431 = vmatprep.subr.mxu0 0.0
        %432 = vmatpush1.msra.mxu0 %v327
        %433 = vmatprep.subr.mxu0 0.0
        %434 = vmatpush1.msra.mxu0 %v328
        %435 = vmatprep.subr.mxu0 0.0
        %436 = vmatpush1.msra.mxu0 %v329
        %437 = vmatprep.subr.mxu0 0.0
        %438 = vmatpush1.msra.mxu0 %v330
        %439 = vmatprep.subr.mxu0 0.0
        %440 = vmatpush1.msra.mxu0 %v331
        %441 = vmatprep.subr.mxu0 0.0
        %442 = vmatpush1.msra.mxu0 %v332
        %443 = vmatprep.subr.mxu0 0.0
        %444 = vmatpush1.msra.mxu0 %v333
        %445 = vmatprep.subr.mxu0 0.0
        %446 = vmatpush1.msra.mxu0 %v334
        %447 = vmatprep.subr.mxu0 0.0
        %448 = vmatpush1.msra.mxu0 %v335
        %449 = vmatprep.subr.mxu0 0.0
        %450 = vmatpush1.msra.mxu0 %v336
        %451 = vmatprep.subr.mxu0 0.0
        %452 = vmatpush1.msra.mxu0 %v337
        %453 = vmatprep.subr.mxu0 0.0
        %454 = vmatpush1.msra.mxu0 %v338
        %455 = vmatprep.subr.mxu0 0.0
        %456 = vmatpush1.msra.mxu0 %v339
        %457 = vmatprep.subr.mxu0 0.0
        %458 = vmatpush1.msra.mxu0 0.0
        %459 = vmatprep.subr.mxu0 0.0
        %460 = vmatpush1.msra.mxu0 0.0
        %461 = vmatprep.subr.mxu0 0.0
        %462 = vmatpush1.msra.mxu0 0.0
        %463 = vmatprep.subr.mxu0 0.0
        %464 = vmatpush1.msra.mxu0 0.0
        %465 = vmatprep.subr.mxu0 0.0
        %466 = vmatpush1.msra.mxu0 0.0
        %467 = vmatprep.subr.mxu0 0.0
        %468 = vmatpush1.msra.mxu0 0.0
        %469 = vmatprep.subr.mxu0 0.0
        %470 = vmatpush1.msra.mxu0 0.0
        %471 = vmatprep.subr.mxu0 0.0
        %472 = vmatpush1.msra.mxu0 0.0
        %473 = vmatprep.subr.mxu0 0.0
        %474 = vmatpush1.msra.mxu0 0.0
        %475 = vmatprep.subr.mxu0 0.0
        %476 = vmatpush1.msra.mxu0 0.0
        %477 = vmatprep.subr.mxu0 0.0
        %478 = vmatpush1.msra.mxu0 0.0
        %479 = vmatprep.subr.mxu0 0.0
        %480 = vmatpush1.msra.mxu0 0.0
        %481 = vmatprep.subr.mxu0 0.0
        %482 = vmatpush1.msra.mxu0 0.0
        %483 = vmatprep.subr.mxu0 0.0
        %484 = vmatpush1.msra.mxu0 0.0
        %485 = vmatprep.subr.mxu0 0.0
        %486 = vmatpush1.msra.mxu0 0.0
        %487 = vmatprep.subr.mxu0 0.0
        %488 = vmatpush1.msra.mxu0 0.0
        %489 = vmatprep.mubr.f32.mxu0 0.0
        %490 = vmatmul.mubr.f32.gmra.mrb[0].mxu0 %v282
        %v491 = vpop.f32.mrb[0].mxu0
        %v492 = vadd.f32 %v407, %v491
        %v493 = vpop.f32.mrb[0].mxu0
        %494 = vmatprep.mubr.f32.mxu0 0.0
        %495 = vmatmul.mubr.f32.gmra.mrb[0].mxu0 %v285
        %v496 = vpop.f32.mrb[0].mxu0
        %v497 = vadd.f32 %v412, %v496
        %v498 = vpop.f32.mrb[0].mxu0
        %499 = vmatprep.mubr.f32.mxu0 0.0
        %500 = vmatmul.mubr.f32.gmra.mrb[0].mxu0 %v288
        %v501 = vpop.f32.mrb[0].mxu0
        %v502 = vadd.f32 %v417, %v501
        %v503 = vpop.f32.mrb[0].mxu0
        %504 = vmatprep.mubr.f32.mxu0 0.0
        %505 = vmatmul.mubr.f32.gmra.mrb[0].mxu0 %v291
        %v506 = vpop.f32.mrb[0].mxu0
        %v507 = vadd.f32 %v422, %v506
        %v508 = vpop.f32.mrb[0].mxu0
        %509 = vdwg.mxu0
        %v510 = vmul.f32 %v492, 0.020833334
        %v511 = vmul.f32 %v497, 0.020833334
        %v512 = vmul.f32 %v502, 0.020833334
        %v513 = vmul.f32 %v507, 0.020833334
        %v514 = vld [vmem:[#allocation7] sm:$0xff]
        %v515 = vld [vmem:[#allocation7 + $0x8] sm:$0xff]
        %v516 = vld [vmem:[#allocation7 + $0x10] sm:$0xff]
        %v517 = vld [vmem:[#allocation7 + $0x18] sm:$0xff]
        %v518 = vld [vmem:[#allocation7 + $0x20] sm:$0xff]
        %v519 = vld [vmem:[#allocation7 + $0x28] sm:$0xff]
        %v520 = vld [vmem:[#allocation7 + $0x30] sm:$0xff]
        %v521 = vld [vmem:[#allocation7 + $0x38] sm:$0xff]
        %v522 = vld [vmem:[#allocation7 + $0x40] sm:$0xff]
        %v523 = vld [vmem:[#allocation7 + $0x48] sm:$0xff]
        %v524 = vld [vmem:[#allocation7 + $0x50] sm:$0xff]
        %v525 = vld [vmem:[#allocation7 + $0x58] sm:$0xff]
        %v526 = vld [vmem:[#allocation7 + $0x60] sm:$0xff]
        %v527 = vld [vmem:[#allocation7 + $0x68] sm:$0xff]
        %v528 = vld [vmem:[#allocation7 + $0x70] sm:$0xff]
        %v529 = vld [vmem:[#allocation7 + $0x78] sm:$0xff]
        %v530 = vld [vmem:[#allocation7 + $0x80] sm:$0xff]
        %v531 = vld [vmem:[#allocation7 + $0x88] sm:$0xff]
        %v532 = vld [vmem:[#allocation7 + $0x90] sm:$0xff]
        %v533 = vld [vmem:[#allocation7 + $0x98] sm:$0xff]
        %v534 = vld [vmem:[#allocation7 + $0xa0] sm:$0xff]
        %v535 = vld [vmem:[#allocation7 + $0xa8] sm:$0xff]
        %v536 = vld [vmem:[#allocation7 + $0xb0] sm:$0xff]
        %v537 = vld [vmem:[#allocation7 + $0xb8] sm:$0xff]
        %v538 = vld [vmem:[#allocation7 + $0xc0] sm:$0xff]
        %v539 = vld [vmem:[#allocation7 + $0xc8] sm:$0xff]
        %v540 = vld [vmem:[#allocation7 + $0xd0] sm:$0xff]
        %v541 = vld [vmem:[#allocation7 + $0xd8] sm:$0xff]
        %v542 = vld [vmem:[#allocation7 + $0xe0] sm:$0xff]
        %v543 = vld [vmem:[#allocation7 + $0xe8] sm:$0xff]
        %v544 = vld [vmem:[#allocation7 + $0xf0] sm:$0xff]
        %v545 = vld [vmem:[#allocation7 + $0xf8] sm:$0xff]
        %v546 = vld [vmem:[#allocation7 + $0x100] sm:$0xff]
        %v547 = vld [vmem:[#allocation7 + $0x108] sm:$0xff]
        %v548 = vld [vmem:[#allocation7 + $0x110] sm:$0xff]
        %v549 = vld [vmem:[#allocation7 + $0x118] sm:$0xff]
        %v550 = vld [vmem:[#allocation7 + $0x120] sm:$0xff]
        %v551 = vld [vmem:[#allocation7 + $0x128] sm:$0xff]
        %v552 = vld [vmem:[#allocation7 + $0x130] sm:$0xff]
        %v553 = vld [vmem:[#allocation7 + $0x138] sm:$0xff]
        %v554 = vld [vmem:[#allocation7 + $0x140] sm:$0xff]
        %v555 = vld [vmem:[#allocation7 + $0x148] sm:$0xff]
        %v556 = vld [vmem:[#allocation7 + $0x150] sm:$0xff]
        %v557 = vld [vmem:[#allocation7 + $0x158] sm:$0xff]
        %v558 = vld [vmem:[#allocation7 + $0x160] sm:$0xff]
        %v559 = vld [vmem:[#allocation7 + $0x168] sm:$0xff]
        %v560 = vld [vmem:[#allocation7 + $0x170] sm:$0xff]
        %v561 = vld [vmem:[#allocation7 + $0x178] sm:$0xff]
        %562 = vmatprep.subr.mxu0 %v515
        %563 = vmatpush1.msra.mxu0 %v514
        %564 = vmatprep.subr.mxu0 %v518
        %565 = vmatpush1.msra.mxu0 %v517
        %566 = vmatprep.subr.mxu0 %v521
        %567 = vmatpush1.msra.mxu0 %v520
        %568 = vmatprep.subr.mxu0 %v524
        %569 = vmatpush1.msra.mxu0 %v523
        %570 = vmatprep.subr.mxu0 %v527
        %571 = vmatpush1.msra.mxu0 %v526
        %572 = vmatprep.subr.mxu0 %v530
        %573 = vmatpush1.msra.mxu0 %v529
        %574 = vmatprep.subr.mxu0 %v533
        %575 = vmatpush1.msra.mxu0 %v532
        %576 = vmatprep.subr.mxu0 %v536
        %577 = vmatpush1.msra.mxu0 %v535
        %578 = vmatprep.subr.mxu0 %v539
        %579 = vmatpush1.msra.mxu0 %v538
        %580 = vmatprep.subr.mxu0 %v542
        %581 = vmatpush1.msra.mxu0 %v541
        %582 = vmatprep.subr.mxu0 %v545
        %583 = vmatpush1.msra.mxu0 %v544
        %584 = vmatprep.subr.mxu0 %v548
        %585 = vmatpush1.msra.mxu0 %v547
        %586 = vmatprep.subr.mxu0 %v551
        %587 = vmatpush1.msra.mxu0 %v550
        %588 = vmatprep.subr.mxu0 %v554
        %589 = vmatpush1.msra.mxu0 %v553
        %590 = vmatprep.subr.mxu0 %v557
        %591 = vmatpush1.msra.mxu0 %v556
        %592 = vmatprep.subr.mxu0 %v560
        %593 = vmatpush1.msra.mxu0 %v559
        %594 = vmatprep.subr.mxu0 0.0
        %595 = vmatpush1.msra.mxu0 0.0
        %596 = vmatprep.subr.mxu0 0.0
        %597 = vmatpush1.msra.mxu0 0.0
        %598 = vmatprep.subr.mxu0 0.0
        %599 = vmatpush1.msra.mxu0 0.0
        %600 = vmatprep.subr.mxu0 0.0
        %601 = vmatpush1.msra.mxu0 0.0
        %602 = vmatprep.subr.mxu0 0.0
        %603 = vmatpush1.msra.mxu0 0.0
        %604 = vmatprep.subr.mxu0 0.0
        %605 = vmatpush1.msra.mxu0 0.0
        %606 = vmatprep.subr.mxu0 0.0
        %607 = vmatpush1.msra.mxu0 0.0
        %608 = vmatprep.subr.mxu0 0.0
        %609 = vmatpush1.msra.mxu0 0.0
        %610 = vmatprep.subr.mxu0 0.0
        %611 = vmatpush1.msra.mxu0 0.0
        %612 = vmatprep.subr.mxu0 0.0
        %613 = vmatpush1.msra.mxu0 0.0
        %614 = vmatprep.subr.mxu0 0.0
        %615 = vmatpush1.msra.mxu0 0.0
        %616 = vmatprep.subr.mxu0 0.0
        %617 = vmatpush1.msra.mxu0 0.0
        %618 = vmatprep.subr.mxu0 0.0
        %619 = vmatpush1.msra.mxu0 0.0
        %620 = vmatprep.subr.mxu0 0.0
        %621 = vmatpush1.msra.mxu0 0.0
        %622 = vmatprep.subr.mxu0 0.0
        %623 = vmatpush1.msra.mxu0 0.0
        %624 = vmatprep.subr.mxu0 0.0
        %625 = vmatpush1.msra.mxu0 0.0
        %626 = vmatprep.mubr.f32.mxu0 0.0
        %627 = vmatmul.mubr.f32.gmra.mrb[0].mxu0 %v510
        %v628 = vpop.f32.mrb[0].mxu0
        %v629 = vadd.f32 0.0, %v628
        %v630 = vpop.f32.mrb[0].mxu0
        %v631 = vadd.f32 0.0, %v630
        %632 = vmatprep.mubr.f32.mxu0 0.0
        %633 = vmatmul.mubr.f32.gmra.mrb[0].mxu0 %v511
        %v634 = vpop.f32.mrb[0].mxu0
        %v635 = vadd.f32 0.0, %v634
        %v636 = vpop.f32.mrb[0].mxu0
        %v637 = vadd.f32 0.0, %v636
        %638 = vmatprep.mubr.f32.mxu0 0.0
        %639 = vmatmul.mubr.f32.gmra.mrb[0].mxu0 %v512
        %v640 = vpop.f32.mrb[0].mxu0
        %v641 = vadd.f32 0.0, %v640
        %v642 = vpop.f32.mrb[0].mxu0
        %v643 = vadd.f32 0.0, %v642
        %644 = vmatprep.mubr.f32.mxu0 0.0
        %645 = vmatmul.mubr.f32.gmra.mrb[0].mxu0 %v513
        %v646 = vpop.f32.mrb[0].mxu0
        %v647 = vadd.f32 0.0, %v646
        %v648 = vpop.f32.mrb[0].mxu0
        %v649 = vadd.f32 0.0, %v648
        %650 = vdwg.mxu0
        %651 = vmatprep.subr.mxu0 0.0
        %652 = vmatpush1.msra.mxu0 %v516
        %653 = vmatprep.subr.mxu0 0.0
        %654 = vmatpush1.msra.mxu0 %v519
        %655 = vmatprep.subr.mxu0 0.0
        %656 = vmatpush1.msra.mxu0 %v522
        %657 = vmatprep.subr.mxu0 0.0
        %658 = vmatpush1.msra.mxu0 %v525
        %659 = vmatprep.subr.mxu0 0.0
        %660 = vmatpush1.msra.mxu0 %v528
        %661 = vmatprep.subr.mxu0 0.0
        %662 = vmatpush1.msra.mxu0 %v531
        %663 = vmatprep.subr.mxu0 0.0
        %664 = vmatpush1.msra.mxu0 %v534
        %665 = vmatprep.subr.mxu0 0.0
        %666 = vmatpush1.msra.mxu0 %v537
        %667 = vmatprep.subr.mxu0 0.0
        %668 = vmatpush1.msra.mxu0 %v540
        %669 = vmatprep.subr.mxu0 0.0
        %670 = vmatpush1.msra.mxu0 %v543
        %671 = vmatprep.subr.mxu0 0.0
        %672 = vmatpush1.msra.mxu0 %v546
        %673 = vmatprep.subr.mxu0 0.0
        %674 = vmatpush1.msra.mxu0 %v549
        %675 = vmatprep.subr.mxu0 0.0
        %676 = vmatpush1.msra.mxu0 %v552
        %677 = vmatprep.subr.mxu0 0.0
        %678 = vmatpush1.msra.mxu0 %v555
        %679 = vmatprep.subr.mxu0 0.0
        %680 = vmatpush1.msra.mxu0 %v558
        %681 = vmatprep.subr.mxu0 0.0
        %682 = vmatpush1.msra.mxu0 %v561
        %683 = vmatprep.subr.mxu0 0.0
        %684 = vmatpush1.msra.mxu0 0.0
        %685 = vmatprep.subr.mxu0 0.0
        %686 = vmatpush1.msra.mxu0 0.0
        %687 = vmatprep.subr.mxu0 0.0
        %688 = vmatpush1.msra.mxu0 0.0
        %689 = vmatprep.subr.mxu0 0.0
        %690 = vmatpush1.msra.mxu0 0.0
        %691 = vmatprep.subr.mxu0 0.0
        %692 = vmatpush1.msra.mxu0 0.0
        %693 = vmatprep.subr.mxu0 0.0
        %694 = vmatpush1.msra.mxu0 0.0
        %695 = vmatprep.subr.mxu0 0.0
        %696 = vmatpush1.msra.mxu0 0.0
        %697 = vmatprep.subr.mxu0 0.0
        %698 = vmatpush1.msra.mxu0 0.0
        %699 = vmatprep.subr.mxu0 0.0
        %700 = vmatpush1.msra.mxu0 0.0
        %701 = vmatprep.subr.mxu0 0.0
        %702 = vmatpush1.msra.mxu0 0.0
        %703 = vmatprep.subr.mxu0 0.0
        %704 = vmatpush1.msra.mxu0 0.0
        %705 = vmatprep.subr.mxu0 0.0
        %706 = vmatpush1.msra.mxu0 0.0
        %707 = vmatprep.subr.mxu0 0.0
        %708 = vmatpush1.msra.mxu0 0.0
        %709 = vmatprep.subr.mxu0 0.0
        %710 = vmatpush1.msra.mxu0 0.0
        %711 = vmatprep.subr.mxu0 0.0
        %712 = vmatpush1.msra.mxu0 0.0
        %713 = vmatprep.subr.mxu0 0.0
        %714 = vmatpush1.msra.mxu0 0.0
        %715 = vmatprep.mubr.f32.mxu0 0.0
        %716 = vmatmul.mubr.f32.gmra.mrb[0].mxu0 %v510
        %v717 = vpop.f32.mrb[0].mxu0
        %v718 = vadd.f32 0.0, %v717
        %v719 = vpop.f32.mrb[0].mxu0
        %720 = vmatprep.mubr.f32.mxu0 0.0
        %721 = vmatmul.mubr.f32.gmra.mrb[0].mxu0 %v511
        %v722 = vpop.f32.mrb[0].mxu0
        %v723 = vadd.f32 0.0, %v722
        %v724 = vpop.f32.mrb[0].mxu0
        %725 = vmatprep.mubr.f32.mxu0 0.0
        %726 = vmatmul.mubr.f32.gmra.mrb[0].mxu0 %v512
        %v727 = vpop.f32.mrb[0].mxu0
        %v728 = vadd.f32 0.0, %v727
        %v729 = vpop.f32.mrb[0].mxu0
        %730 = vmatprep.mubr.f32.mxu0 0.0
        %731 = vmatmul.mubr.f32.gmra.mrb[0].mxu0 %v513
        %v732 = vpop.f32.mrb[0].mxu0
        %v733 = vadd.f32 0.0, %v732
        %v734 = vpop.f32.mrb[0].mxu0
        %735 = vdwg.mxu0
        %v736 = vsub.f32 %v280, %v629
        %v737 = vsub.f32 %v281, %v631
        %v738 = vsub.f32 %v282, %v718
        %v739 = vsub.f32 %v283, %v635
        %v740 = vsub.f32 %v284, %v637
        %v741 = vsub.f32 %v285, %v723
        %v742 = vsub.f32 %v286, %v641
        %v743 = vsub.f32 %v287, %v643
        %v744 = vsub.f32 %v288, %v728
        %v745 = vsub.f32 %v289, %v647
        %v746 = vsub.f32 %v290, %v649
        %v747 = vsub.f32 %v291, %v733
        %v748 = vmul.f32 %v736, %v736
        %v749 = vmul.f32 %v737, %v737
        %v750 = vmul.f32 %v738, %v738
        %v751 = vmul.f32 %v739, %v739
        %v752 = vmul.f32 %v740, %v740
        %v753 = vmul.f32 %v741, %v741
        %v754 = vmul.f32 %v742, %v742
        %v755 = vmul.f32 %v743, %v743
        %v756 = vmul.f32 %v744, %v744
        %v757 = vmul.f32 %v745, %v745
        %v758 = vmul.f32 %v746, %v746
        %v759 = vmul.f32 %v747, %v747
        %760 = vmatprep.subr.mxu0 0.0
        %761 = vmatpush1.msra.mxu0 %v292
        %762 = vmatprep.subr.mxu0 0.0
        %763 = vmatpush1.msra.mxu0 %v293
        %764 = vmatprep.subr.mxu0 0.0
        %765 = vmatpush1.msra.mxu0 %v294
        %766 = vmatprep.subr.mxu0 0.0
        %767 = vmatpush1.msra.mxu0 %v295
        %768 = vmatprep.subr.mxu0 0.0
        %769 = vmatpush1.msra.mxu0 %v296
        %770 = vmatprep.subr.mxu0 0.0
        %771 = vmatpush1.msra.mxu0 %v297
        %772 = vmatprep.subr.mxu0 0.0
        %773 = vmatpush1.msra.mxu0 %v298
        %774 = vmatprep.subr.mxu0 0.0
        %775 = vmatpush1.msra.mxu0 %v299
        %776 = vmatprep.subr.mxu0 0.0
        %777 = vmatpush1.msra.mxu0 %v300
        %778 = vmatprep.subr.mxu0 0.0
        %779 = vmatpush1.msra.mxu0 %v301
        %780 = vmatprep.subr.mxu0 0.0
        %781 = vmatpush1.msra.mxu0 %v302
        %782 = vmatprep.subr.mxu0 0.0
        %783 = vmatpush1.msra.mxu0 %v303
        %784 = vmatprep.subr.mxu0 0.0
        %785 = vmatpush1.msra.mxu0 %v304
        %786 = vmatprep.subr.mxu0 0.0
        %787 = vmatpush1.msra.mxu0 %v305
        %788 = vmatprep.subr.mxu0 0.0
        %789 = vmatpush1.msra.mxu0 %v306
        %790 = vmatprep.subr.mxu0 0.0
        %791 = vmatpush1.msra.mxu0 %v307
        %792 = vmatprep.subr.mxu0 0.0
        %793 = vmatpush1.msra.mxu0 %v308
        %794 = vmatprep.subr.mxu0 0.0
        %795 = vmatpush1.msra.mxu0 %v309
        %796 = vmatprep.subr.mxu0 0.0
        %797 = vmatpush1.msra.mxu0 %v310
        %798 = vmatprep.subr.mxu0 0.0
        %799 = vmatpush1.msra.mxu0 %v311
        %800 = vmatprep.subr.mxu0 0.0
        %801 = vmatpush1.msra.mxu0 %v312
        %802 = vmatprep.subr.mxu0 0.0
        %803 = vmatpush1.msra.mxu0 %v313
        %804 = vmatprep.subr.mxu0 0.0
        %805 = vmatpush1.msra.mxu0 %v314
        %806 = vmatprep.subr.mxu0 0.0
        %807 = vmatpush1.msra.mxu0 %v315
        %808 = vmatprep.subr.mxu0 0.0
        %809 = vmatpush1.msra.mxu0 %v316
        %810 = vmatprep.subr.mxu0 0.0
        %811 = vmatpush1.msra.mxu0 %v317
        %812 = vmatprep.subr.mxu0 0.0
        %813 = vmatpush1.msra.mxu0 %v318
        %814 = vmatprep.subr.mxu0 0.0
        %815 = vmatpush1.msra.mxu0 %v319
        %816 = vmatprep.subr.mxu0 0.0
        %817 = vmatpush1.msra.mxu0 %v320
        %818 = vmatprep.subr.mxu0 0.0
        %819 = vmatpush1.msra.mxu0 %v321
        %820 = vmatprep.subr.mxu0 0.0
        %821 = vmatpush1.msra.mxu0 %v322
        %822 = vmatprep.subr.mxu0 0.0
        %823 = vmatpush1.msra.mxu0 %v323
        %824 = vmatprep.mubr.f32.mxu0 %v749
        %825 = vmatmul.mubr.f32.gmra.mrb[0].mxu0 %v748
        %v826 = vpop.f32.mrb[0].mxu0
        %v827 = vadd.f32 0.0, %v826
        %v828 = vpop.f32.mrb[0].mxu0
        %829 = vmatprep.mubr.f32.mxu0 %v752
        %830 = vmatmul.mubr.f32.gmra.mrb[0].mxu0 %v751
        %v831 = vpop.f32.mrb[0].mxu0
        %v832 = vadd.f32 0.0, %v831
        %v833 = vpop.f32.mrb[0].mxu0
        %834 = vmatprep.mubr.f32.mxu0 %v755
        %835 = vmatmul.mubr.f32.gmra.mrb[0].mxu0 %v754
        %v836 = vpop.f32.mrb[0].mxu0
        %v837 = vadd.f32 0.0, %v836
        %v838 = vpop.f32.mrb[0].mxu0
        %839 = vmatprep.mubr.f32.mxu0 %v758
        %840 = vmatmul.mubr.f32.gmra.mrb[0].mxu0 %v757
        %v841 = vpop.f32.mrb[0].mxu0
        %v842 = vadd.f32 0.0, %v841
        %v843 = vpop.f32.mrb[0].mxu0
        %844 = vdwg.mxu0
        %845 = vmatprep.subr.mxu0 0.0
        %846 = vmatpush1.msra.mxu0 %v324
        %847 = vmatprep.subr.mxu0 0.0
        %848 = vmatpush1.msra.mxu0 %v325
        %849 = vmatprep.subr.mxu0 0.0
        %850 = vmatpush1.msra.mxu0 %v326
        %851 = vmatprep.subr.mxu0 0.0
        %852 = vmatpush1.msra.mxu0 %v327
        %853 = vmatprep.subr.mxu0 0.0
        %854 = vmatpush1.msra.mxu0 %v328
        %855 = vmatprep.subr.mxu0 0.0
        %856 = vmatpush1.msra.mxu0 %v329
        %857 = vmatprep.subr.mxu0 0.0
        %858 = vmatpush1.msra.mxu0 %v330
        %859 = vmatprep.subr.mxu0 0.0
        %860 = vmatpush1.msra.mxu0 %v331
        %861 = vmatprep.subr.mxu0 0.0
        %862 = vmatpush1.msra.mxu0 %v332
        %863 = vmatprep.subr.mxu0 0.0
        %864 = vmatpush1.msra.mxu0 %v333
        %865 = vmatprep.subr.mxu0 0.0
        %866 = vmatpush1.msra.mxu0 %v334
        %867 = vmatprep.subr.mxu0 0.0
        %868 = vmatpush1.msra.mxu0 %v335
        %869 = vmatprep.subr.mxu0 0.0
        %870 = vmatpush1.msra.mxu0 %v336
        %871 = vmatprep.subr.mxu0 0.0
        %872 = vmatpush1.msra.mxu0 %v337
        %873 = vmatprep.subr.mxu0 0.0
        %874 = vmatpush1.msra.mxu0 %v338
        %875 = vmatprep.subr.mxu0 0.0
        %876 = vmatpush1.msra.mxu0 %v339
        %877 = vmatprep.subr.mxu0 0.0
        %878 = vmatpush1.msra.mxu0 0.0
        %879 = vmatprep.subr.mxu0 0.0
        %880 = vmatpush1.msra.mxu0 0.0
        %881 = vmatprep.subr.mxu0 0.0
        %882 = vmatpush1.msra.mxu0 0.0
        %883 = vmatprep.subr.mxu0 0.0
        %884 = vmatpush1.msra.mxu0 0.0
        %885 = vmatprep.subr.mxu0 0.0
        %886 = vmatpush1.msra.mxu0 0.0
        %887 = vmatprep.subr.mxu0 0.0
        %888 = vmatpush1.msra.mxu0 0.0
        %889 = vmatprep.subr.mxu0 0.0
        %890 = vmatpush1.msra.mxu0 0.0
        %891 = vmatprep.subr.mxu0 0.0
        %892 = vmatpush1.msra.mxu0 0.0
        %893 = vmatprep.subr.mxu0 0.0
        %894 = vmatpush1.msra.mxu0 0.0
        %895 = vmatprep.subr.mxu0 0.0
        %896 = vmatpush1.msra.mxu0 0.0
        %897 = vmatprep.subr.mxu0 0.0
        %898 = vmatpush1.msra.mxu0 0.0
        %899 = vmatprep.subr.mxu0 0.0
        %900 = vmatpush1.msra.mxu0 0.0
        %901 = vmatprep.subr.mxu0 0.0
        %902 = vmatpush1.msra.mxu0 0.0
        %903 = vmatprep.subr.mxu0 0.0
        %904 = vmatpush1.msra.mxu0 0.0
        %905 = vmatprep.subr.mxu0 0.0
        %906 = vmatpush1.msra.mxu0 0.0
        %907 = vmatprep.subr.mxu0 0.0
        %908 = vmatpush1.msra.mxu0 0.0
        %909 = vmatprep.mubr.f32.mxu0 0.0
        %910 = vmatmul.mubr.f32.gmra.mrb[0].mxu0 %v750
        %v911 = vpop.f32.mrb[0].mxu0
        %v912 = vadd.f32 %v827, %v911
        %v913 = vpop.f32.mrb[0].mxu0
        %914 = vmatprep.mubr.f32.mxu0 0.0
        %915 = vmatmul.mubr.f32.gmra.mrb[0].mxu0 %v753
        %v916 = vpop.f32.mrb[0].mxu0
        %v917 = vadd.f32 %v832, %v916
        %v918 = vpop.f32.mrb[0].mxu0
        %919 = vmatprep.mubr.f32.mxu0 0.0
        %920 = vmatmul.mubr.f32.gmra.mrb[0].mxu0 %v756
        %v921 = vpop.f32.mrb[0].mxu0
        %v922 = vadd.f32 %v837, %v921
        %v923 = vpop.f32.mrb[0].mxu0
        %924 = vmatprep.mubr.f32.mxu0 0.0
        %925 = vmatmul.mubr.f32.gmra.mrb[0].mxu0 %v759
        %v926 = vpop.f32.mrb[0].mxu0
        %v927 = vadd.f32 %v842, %v926
        %v928 = vpop.f32.mrb[0].mxu0
        %929 = vdwg.mxu0
        %v930 = vmul.f32 %v912, 0.020833334
        %v931 = vmul.f32 %v917, 0.020833334
        %v932 = vmul.f32 %v922, 0.020833334
        %v933 = vmul.f32 %v927, 0.020833334
        %v934 = vadd.f32 %v930, 1e-05
        %v935 = vadd.f32 %v931, 1e-05
        %v936 = vadd.f32 %v932, 1e-05
        %v937 = vadd.f32 %v933, 1e-05
        %v938 = vrsqrt.pop %v934
        %v939 = vrsqrt.pop %v935
        %v940 = vrsqrt.pop %v936
        %v941 = vrsqrt.pop %v937
        %v942 = vld [vmem:[#allocation8] sm:$0xff]
        %v943 = vld [vmem:[#allocation8 + $0x8] sm:$0xff]
        %v944 = vld [vmem:[#allocation8 + $0x10] sm:$0xff]
        %v945 = vld [vmem:[#allocation8 + $0x18] sm:$0xff]
        %v946 = vld [vmem:[#allocation8 + $0x20] sm:$0xff]
        %v947 = vld [vmem:[#allocation8 + $0x28] sm:$0xff]
        %v948 = vld [vmem:[#allocation8 + $0x30] sm:$0xff]
        %v949 = vld [vmem:[#allocation8 + $0x38] sm:$0xff]
        %v950 = vld [vmem:[#allocation8 + $0x40] sm:$0xff]
        %v951 = vld [vmem:[#allocation8 + $0x48] sm:$0xff]
        %v952 = vld [vmem:[#allocation8 + $0x50] sm:$0xff]
        %v953 = vld [vmem:[#allocation8 + $0x58] sm:$0xff]
        %v954 = vld [vmem:[#allocation8 + $0x60] sm:$0xff]
        %v955 = vld [vmem:[#allocation8 + $0x68] sm:$0xff]
        %v956 = vld [vmem:[#allocation8 + $0x70] sm:$0xff]
        %v957 = vld [vmem:[#allocation8 + $0x78] sm:$0xff]
        %v958 = vld [vmem:[#allocation8 + $0x80] sm:$0xff]
        %v959 = vld [vmem:[#allocation8 + $0x88] sm:$0xff]
        %v960 = vld [vmem:[#allocation8 + $0x90] sm:$0xff]
        %v961 = vld [vmem:[#allocation8 + $0x98] sm:$0xff]
        %v962 = vld [vmem:[#allocation8 + $0xa0] sm:$0xff]
        %v963 = vld [vmem:[#allocation8 + $0xa8] sm:$0xff]
        %v964 = vld [vmem:[#allocation8 + $0xb0] sm:$0xff]
        %v965 = vld [vmem:[#allocation8 + $0xb8] sm:$0xff]
        %v966 = vld [vmem:[#allocation8 + $0xc0] sm:$0xff]
        %v967 = vld [vmem:[#allocation8 + $0xc8] sm:$0xff]
        %v968 = vld [vmem:[#allocation8 + $0xd0] sm:$0xff]
        %v969 = vld [vmem:[#allocation8 + $0xd8] sm:$0xff]
        %v970 = vld [vmem:[#allocation8 + $0xe0] sm:$0xff]
        %v971 = vld [vmem:[#allocation8 + $0xe8] sm:$0xff]
        %v972 = vld [vmem:[#allocation8 + $0xf0] sm:$0xff]
        %v973 = vld [vmem:[#allocation8 + $0xf8] sm:$0xff]
        %v974 = vld [vmem:[#allocation8 + $0x100] sm:$0xff]
        %v975 = vld [vmem:[#allocation8 + $0x108] sm:$0xff]
        %v976 = vld [vmem:[#allocation8 + $0x110] sm:$0xff]
        %v977 = vld [vmem:[#allocation8 + $0x118] sm:$0xff]
        %v978 = vld [vmem:[#allocation8 + $0x120] sm:$0xff]
        %v979 = vld [vmem:[#allocation8 + $0x128] sm:$0xff]
        %v980 = vld [vmem:[#allocation8 + $0x130] sm:$0xff]
        %v981 = vld [vmem:[#allocation8 + $0x138] sm:$0xff]
        %v982 = vld [vmem:[#allocation8 + $0x140] sm:$0xff]
        %v983 = vld [vmem:[#allocation8 + $0x148] sm:$0xff]
        %v984 = vld [vmem:[#allocation8 + $0x150] sm:$0xff]
        %v985 = vld [vmem:[#allocation8 + $0x158] sm:$0xff]
        %v986 = vld [vmem:[#allocation8 + $0x160] sm:$0xff]
        %v987 = vld [vmem:[#allocation8 + $0x168] sm:$0xff]
        %v988 = vld [vmem:[#allocation8 + $0x170] sm:$0xff]
        %v989 = vld [vmem:[#allocation8 + $0x178] sm:$0xff]
        %990 = vmatprep.subr.mxu0 %v943
        %991 = vmatpush1.msra.mxu0 %v942
        %992 = vmatprep.subr.mxu0 %v946
        %993 = vmatpush1.msra.mxu0 %v945
        %994 = vmatprep.subr.mxu0 %v949
        %995 = vmatpush1.msra.mxu0 %v948
        %996 = vmatprep.subr.mxu0 %v952
        %997 = vmatpush1.msra.mxu0 %v951
        %998 = vmatprep.subr.mxu0 %v955
        %999 = vmatpush1.msra.mxu0 %v954
        %1000 = vmatprep.subr.mxu0 %v958
        %1001 = vmatpush1.msra.mxu0 %v957
        %1002 = vmatprep.subr.mxu0 %v961
        %1003 = vmatpush1.msra.mxu0 %v960
        %1004 = vmatprep.subr.mxu0 %v964
        %1005 = vmatpush1.msra.mxu0 %v963
        %1006 = vmatprep.subr.mxu0 %v967
        %1007 = vmatpush1.msra.mxu0 %v966
        %1008 = vmatprep.subr.mxu0 %v970
        %1009 = vmatpush1.msra.mxu0 %v969
        %1010 = vmatprep.subr.mxu0 %v973
        %1011 = vmatpush1.msra.mxu0 %v972
        %1012 = vmatprep.subr.mxu0 %v976
        %1013 = vmatpush1.msra.mxu0 %v975
        %1014 = vmatprep.subr.mxu0 %v979
        %1015 = vmatpush1.msra.mxu0 %v978
        %1016 = vmatprep.subr.mxu0 %v982
        %1017 = vmatpush1.msra.mxu0 %v981
        %1018 = vmatprep.subr.mxu0 %v985
        %1019 = vmatpush1.msra.mxu0 %v984
        %1020 = vmatprep.subr.mxu0 %v988
        %1021 = vmatpush1.msra.mxu0 %v987
        %1022 = vmatprep.subr.mxu0 0.0
        %1023 = vmatpush1.msra.mxu0 0.0
        %1024 = vmatprep.subr.mxu0 0.0
        %1025 = vmatpush1.msra.mxu0 0.0
        %1026 = vmatprep.subr.mxu0 0.0
        %1027 = vmatpush1.msra.mxu0 0.0
        %1028 = vmatprep.subr.mxu0 0.0
        %1029 = vmatpush1.msra.mxu0 0.0
        %1030 = vmatprep.subr.mxu0 0.0
        %1031 = vmatpush1.msra.mxu0 0.0
        %1032 = vmatprep.subr.mxu0 0.0
        %1033 = vmatpush1.msra.mxu0 0.0
        %1034 = vmatprep.subr.mxu0 0.0
        %1035 = vmatpush1.msra.mxu0 0.0
        %1036 = vmatprep.subr.mxu0 0.0
        %1037 = vmatpush1.msra.mxu0 0.0
        %1038 = vmatprep.subr.mxu0 0.0
        %1039 = vmatpush1.msra.mxu0 0.0
        %1040 = vmatprep.subr.mxu0 0.0
        %1041 = vmatpush1.msra.mxu0 0.0
        %1042 = vmatprep.subr.mxu0 0.0
        %1043 = vmatpush1.msra.mxu0 0.0
        %1044 = vmatprep.subr.mxu0 0.0
        %1045 = vmatpush1.msra.mxu0 0.0
        %1046 = vmatprep.subr.mxu0 0.0
        %1047 = vmatpush1.msra.mxu0 0.0
        %1048 = vmatprep.subr.mxu0 0.0
        %1049 = vmatpush1.msra.mxu0 0.0
        %1050 = vmatprep.subr.mxu0 0.0
        %1051 = vmatpush1.msra.mxu0 0.0
        %1052 = vmatprep.subr.mxu0 0.0
        %1053 = vmatpush1.msra.mxu0 0.0
        %1054 = vmatprep.mubr.f32.mxu0 0.0
        %1055 = vmatmul.mubr.f32.gmra.mrb[0].mxu0 %v938
        %v1056 = vpop.f32.mrb[0].mxu0
        %v1057 = vadd.f32 0.0, %v1056
        %v1058 = vpop.f32.mrb[0].mxu0
        %v1059 = vadd.f32 0.0, %v1058
        %1060 = vmatprep.mubr.f32.mxu0 0.0
        %1061 = vmatmul.mubr.f32.gmra.mrb[0].mxu0 %v939
        %v1062 = vpop.f32.mrb[0].mxu0
        %v1063 = vadd.f32 0.0, %v1062
        %v1064 = vpop.f32.mrb[0].mxu0
        %v1065 = vadd.f32 0.0, %v1064
        %1066 = vmatprep.mubr.f32.mxu0 0.0
        %1067 = vmatmul.mubr.f32.gmra.mrb[0].mxu0 %v940
        %v1068 = vpop.f32.mrb[0].mxu0
        %v1069 = vadd.f32 0.0, %v1068
        %v1070 = vpop.f32.mrb[0].mxu0
        %v1071 = vadd.f32 0.0, %v1070
        %1072 = vmatprep.mubr.f32.mxu0 0.0
        %1073 = vmatmul.mubr.f32.gmra.mrb[0].mxu0 %v941
        %v1074 = vpop.f32.mrb[0].mxu0
        %v1075 = vadd.f32 0.0, %v1074
        %v1076 = vpop.f32.mrb[0].mxu0
        %v1077 = vadd.f32 0.0, %v1076
        %1078 = vdwg.mxu0
        %1079 = vmatprep.subr.mxu0 0.0
        %1080 = vmatpush1.msra.mxu0 %v944
        %1081 = vmatprep.subr.mxu0 0.0
        %1082 = vmatpush1.msra.mxu0 %v947
        %1083 = vmatprep.subr.mxu0 0.0
        %1084 = vmatpush1.msra.mxu0 %v950
        %1085 = vmatprep.subr.mxu0 0.0
        %1086 = vmatpush1.msra.mxu0 %v953
        %1087 = vmatprep.subr.mxu0 0.0
        %1088 = vmatpush1.msra.mxu0 %v956
        %1089 = vmatprep.subr.mxu0 0.0
        %1090 = vmatpush1.msra.mxu0 %v959
        %1091 = vmatprep.subr.mxu0 0.0
        %1092 = vmatpush1.msra.mxu0 %v962
        %1093 = vmatprep.subr.mxu0 0.0
        %1094 = vmatpush1.msra.mxu0 %v965
        %1095 = vmatprep.subr.mxu0 0.0
        %1096 = vmatpush1.msra.mxu0 %v968
        %1097 = vmatprep.subr.mxu0 0.0
        %1098 = vmatpush1.msra.mxu0 %v971
        %1099 = vmatprep.subr.mxu0 0.0
        %1100 = vmatpush1.msra.mxu0 %v974
        %1101 = vmatprep.subr.mxu0 0.0
        %1102 = vmatpush1.msra.mxu0 %v977
        %1103 = vmatprep.subr.mxu0 0.0
        %1104 = vmatpush1.msra.mxu0 %v980
        %1105 = vmatprep.subr.mxu0 0.0
        %1106 = vmatpush1.msra.mxu0 %v983
        %1107 = vmatprep.subr.mxu0 0.0
        %1108 = vmatpush1.msra.mxu0 %v986
        %1109 = vmatprep.subr.mxu0 0.0
        %1110 = vmatpush1.msra.mxu0 %v989
        %1111 = vmatprep.subr.mxu0 0.0
        %1112 = vmatpush1.msra.mxu0 0.0
        %1113 = vmatprep.subr.mxu0 0.0
        %1114 = vmatpush1.msra.mxu0 0.0
        %1115 = vmatprep.subr.mxu0 0.0
        %1116 = vmatpush1.msra.mxu0 0.0
        %1117 = vmatprep.subr.mxu0 0.0
        %1118 = vmatpush1.msra.mxu0 0.0
        %1119 = vmatprep.subr.mxu0 0.0
        %1120 = vmatpush1.msra.mxu0 0.0
        %1121 = vmatprep.subr.mxu0 0.0
        %1122 = vmatpush1.msra.mxu0 0.0
        %1123 = vmatprep.subr.mxu0 0.0
        %1124 = vmatpush1.msra.mxu0 0.0
        %1125 = vmatprep.subr.mxu0 0.0
        %1126 = vmatpush1.msra.mxu0 0.0
        %1127 = vmatprep.subr.mxu0 0.0
        %1128 = vmatpush1.msra.mxu0 0.0
        %1129 = vmatprep.subr.mxu0 0.0
        %1130 = vmatpush1.msra.mxu0 0.0
        %1131 = vmatprep.subr.mxu0 0.0
        %1132 = vmatpush1.msra.mxu0 0.0
        %1133 = vmatprep.subr.mxu0 0.0
        %1134 = vmatpush1.msra.mxu0 0.0
        %1135 = vmatprep.subr.mxu0 0.0
        %1136 = vmatpush1.msra.mxu0 0.0
        %1137 = vmatprep.subr.mxu0 0.0
        %1138 = vmatpush1.msra.mxu0 0.0
        %1139 = vmatprep.subr.mxu0 0.0
        %1140 = vmatpush1.msra.mxu0 0.0
        %1141 = vmatprep.subr.mxu0 0.0
        %1142 = vmatpush1.msra.mxu0 0.0
        %1143 = vmatprep.mubr.f32.mxu0 0.0
        %1144 = vmatmul.mubr.f32.gmra.mrb[0].mxu0 %v938
        %v1145 = vpop.f32.mrb[0].mxu0
        %v1146 = vadd.f32 0.0, %v1145
        %v1147 = vpop.f32.mrb[0].mxu0
        %1148 = vmatprep.mubr.f32.mxu0 0.0
        %1149 = vmatmul.mubr.f32.gmra.mrb[0].mxu0 %v939
        %v1150 = vpop.f32.mrb[0].mxu0
        %v1151 = vadd.f32 0.0, %v1150
        %v1152 = vpop.f32.mrb[0].mxu0
        %1153 = vmatprep.mubr.f32.mxu0 0.0
        %1154 = vmatmul.mubr.f32.gmra.mrb[0].mxu0 %v940
        %v1155 = vpop.f32.mrb[0].mxu0
        %v1156 = vadd.f32 0.0, %v1155
        %v1157 = vpop.f32.mrb[0].mxu0
        %1158 = vmatprep.mubr.f32.mxu0 0.0
        %1159 = vmatmul.mubr.f32.gmra.mrb[0].mxu0 %v941
        %v1160 = vpop.f32.mrb[0].mxu0
        %v1161 = vadd.f32 0.0, %v1160
        %v1162 = vpop.f32.mrb[0].mxu0
        %1163 = vdwg.mxu0
        %v1164 = vmul.f32 %v280, %v1057
        %v1165 = vmul.f32 %v281, %v1059
        %v1166 = vmul.f32 %v282, %v1146
        %v1167 = vmul.f32 %v283, %v1063
        %v1168 = vmul.f32 %v284, %v1065
        %v1169 = vmul.f32 %v285, %v1151
        %v1170 = vmul.f32 %v286, %v1069
        %v1171 = vmul.f32 %v287, %v1071
        %v1172 = vmul.f32 %v288, %v1156
        %v1173 = vmul.f32 %v289, %v1075
        %v1174 = vmul.f32 %v290, %v1077
        %v1175 = vmul.f32 %v291, %v1161
        %1176 = vst [vmem:[%s267] sm:$0xff] %v1164
        %1177 = vst [vmem:[%s267 + $0x8] sm:$0xff] %v1165
        %1178 = vst [vmem:[%s267 + $0x10] sm:$0xff] %v1166
        %1179 = vst [vmem:[%s267 + $0x18] sm:$0xff] %v1167
        %1180 = vst [vmem:[%s267 + $0x20] sm:$0xff] %v1168
        %1181 = vst [vmem:[%s267 + $0x28] sm:$0xff] %v1169
        %1182 = vst [vmem:[%s267 + $0x30] sm:$0xff] %v1170
        %1183 = vst [vmem:[%s267 + $0x38] sm:$0xff] %v1171
        %1184 = vst [vmem:[%s267 + $0x40] sm:$0xff] %v1172
        %1185 = vst [vmem:[%s267 + $0x48] sm:$0xff] %v1173
        %1186 = vst [vmem:[%s267 + $0x50] sm:$0xff] %v1174
        %1187 = vst [vmem:[%s267 + $0x58] sm:$0xff] %v1175
        %s1188 = sand.u32 %s120, 1
        %s1189 = scalar_lea.sflag [#allocation4], %s1188
        %s1190 = sand.u32 %s120, 1
        %s1191 = smul.addr %s1190, 96
        %s1192 = scalar_lea.vmem [#allocation10], %s1191
        // Predicated region
        $region53: #{tpu_custom_call.1} parent=35 // pred_check
          %p1193 = pneg %p130
        $region54: #{tpu_custom_call.1} parent=35 // pred_check_branch
          %1195 = sbr.rel (%p1193) target = $region56
        $region55: #{tpu_custom_call.1} parent=35 // pred_region
          %s1196 = smul.u32 4, %s23
          %s1197 = ssub.s32 5, %s1196
          %p1198 = scmp.lt.s32.totalorder %s1197, 4
          %s1199 = scalar_select %p1198, %s1197, 4
          %s1200 = smul.u32 128, %s1199
          %s1201 = smul.u32 %s1200, 3
          %s1203 = ssub.s32 1536, %s1201
          %1204 = vsyncadd %s1189, %s1203
          %p1205 = scmp.ne.s32.totalorder 0, %s1201
          %s1206 = smul.addr %s1196, 3
          %s1207 = smul.addr %s1206, 128
          %s1208 = scalar_lea.hbm %s4, %s1207
          %s1209 = smul.u32 24, %s1199
          %s1210 = sshll.u32 %s1192, 4
          %s1211 = int_to_ptr.vmem [resolvable:$true] %s1210
          %s1212 = sshll.u32 %s1209, 4
          %1216 = dma.vmem_to_hbm [thread:$0]  (%p1205), %s1211, %s1212, %s1208, %s1189, 384, 384, 24
        $region56: #{tpu_custom_call.1} parent=35 // pred_fallthru
          _
      $region36: #{tpu_custom_call.1} parent=5 // pred_fallthru
        _
      %p1217 = scmp.le.s32.totalorder 2, %s18
      // Predicated region
      $region57: #{tpu_custom_call.1} parent=5 // pred_check
        %p1218 = pneg %p1217
      $region58: #{tpu_custom_call.1} parent=5 // pred_check_branch
        %1220 = sbr.rel (%p1218) target = $region60
      $region59: #{tpu_custom_call.1} parent=5 // pred_region
        %s1221 = ssub.s32 %s18, 2
        // Predicated region
        $region61: #{tpu_custom_call.1} parent=59 // pred_check
          %p1222 = pneg %p136
        $region62: #{tpu_custom_call.1} parent=59 // pred_check_branch
          %1224 = sbr.rel (%p1222) target = $region64
        $region63: #{tpu_custom_call.1} parent=59 // pred_region
          %s1225 = sand.u32 %s121, 1
          %s1226 = scalar_lea.sflag [#allocation4], %s1225
          %s1227 = sand.u32 %s121, 1
          %s1228 = smul.addr %s1227, 96
          %s1229 = scalar_lea.vmem [#allocation10], %s1228
          %1230 = dma.done %s1226, 1536
        $region64: #{tpu_custom_call.1} parent=59 // pred_fallthru
          _
      $region60: #{tpu_custom_call.1} parent=5 // pred_fallthru
        _
    $region6: #{tpu_custom_call.1} parent=1 // loop_footer
      %s22 = sadd.s32 1, %s18
    $region7: #{tpu_custom_call.1} parent=1 // loop_footer_branch
      %17 = sbr.rel target = $region3
    $region8: #{tpu_custom_call.1} parent=1 // loop_exit
      _
    %1231 = vsyncpa [#allocation3], 1
    %s1232 = scalar_lea.sflag [#allocation3], 1
    %1233 = vsyncpa %s1232, 1
    %1234 = vsyncpa [#allocation6], 1
    %1235 = vsyncpa [#allocation9], 1
    %1236 = vsyncpa [#allocation4], 1
    %s1237 = scalar_lea.sflag [#allocation4], 1
    %1238 = vsyncpa %s1237, 1

</llo_original>
